<compile_context>
chip_gen: v7x
topology: tpu7x:2x2x1
jax: 0.10.0
libtpu: 0.0.40
codegen_flags: <defaults>
</compile_context>

<pallas_src>
from functools import partial

import jax
import jax.numpy as jnp
from jax.experimental import pallas as pl
from jax.experimental.pallas import tpu as pltpu


def _round_up(x, m):
    return ((x + m - 1) // m) * m


def _conv_block_gemm_kernel(p_ref, w_ref, b_ref, o_ref):
    """One M-tile of the im2col GEMM:  o = relu(p @ w + b).

    p_ref: (tm, Kc_pad)      im2col patches (contraction dim zero-padded)
    w_ref: (Kc_pad, Co_pad)  reshaped conv weights (lane-padded out channels)
    b_ref: (1, Co_pad)       bias (lane-padded)
    o_ref: (tm, Co_pad)
    """
    acc = jnp.dot(p_ref[...], w_ref[...], preferred_element_type=jnp.float32)
    acc = acc + b_ref[...]
    o_ref[...] = jnp.maximum(acc, 0.0).astype(o_ref.dtype)


@partial(jax.jit, static_argnames=("tm_max", "use_bf16"))
def conv_block_forward(x_ncl, weight, bias, *, tm_max=1024, use_bf16=False):
    """Pallas implementation of ConvBlock.forward (eval mode).

    x_ncl:  (N, C_in, L)        -- PyTorch NCL layout
    weight: (C_out, C_in, K)    -- nn.Conv1d weight layout
    bias:   (C_out,)
    returns (N, C_out, L)
    """
    N, C_in, L = x_ncl.shape
    C_out, _, K = weight.shape
    pad_left = (K - 1) // 2
    pad_right = K - 1 - pad_left

    # ---- im2col + layout glue (fused by XLA; hot path is the GEMM) ----------
    x = jnp.transpose(x_ncl, (0, 2, 1))                             # (N, L, C_in)
    x_pad = jnp.pad(x, ((0, 0), (pad_left, pad_right), (0, 0)))     # (N, L+K-1, C_in)
    # patches[n, l, k, c] = x_pad[n, l + k, c]
    patches = jnp.stack([x_pad[:, k:k + L, :] for k in range(K)], axis=2)
    patches = patches.reshape(N * L, K * C_in)                      # (N*L, K*C_in)

    # ---- lane/sublane-friendly zero padding ---------------------------------
    M = N * L
    Kc = K * C_in
    Kc_pad = _round_up(Kc, 128)        # lane-dense contraction operand (60 -> 128)
    Co_pad = _round_up(C_out, 128)     # unmasked output stores (320 -> 384)
    tm = min(_round_up(M, 8), tm_max)  # rows per grid step (multiple of 8)
    M_pad = _round_up(M, tm)

    patches = jnp.pad(patches, ((0, M_pad - M), (0, Kc_pad - Kc)))
    w2 = jnp.transpose(weight, (2, 1, 0)).reshape(Kc, C_out)        # (K*C_in, C_out)
    w2 = jnp.pad(w2, ((0, Kc_pad - Kc), (0, Co_pad - C_out)))
    b2 = jnp.pad(bias, (0, Co_pad - C_out)).reshape(1, Co_pad)

    if use_bf16:
        # v6e/v7x: bf16-native MXU; accumulation stays f32 inside the kernel.
        patches = patches.astype(jnp.bfloat16)
        w2 = w2.astype(jnp.bfloat16)

    grid = (M_pad // tm,)
    out = pl.pallas_call(
        _conv_block_gemm_kernel,
        out_shape=jax.ShapeDtypeStruct((M_pad, Co_pad), x_ncl.dtype),
        grid=grid,
        in_specs=[
            pl.BlockSpec((tm, Kc_pad), lambda i: (i, 0)),
            pl.BlockSpec((Kc_pad, Co_pad), lambda i: (0, 0)),
            pl.BlockSpec((1, Co_pad), lambda i: (0, 0)),
        ],
        out_specs=pl.BlockSpec((tm, Co_pad), lambda i: (i, 0)),
        compiler_params=pltpu.CompilerParams(
            dimension_semantics=("parallel",)),
    )(patches, w2, b2)

    out = out[:M, :C_out].reshape(N, L, C_out)                      # (N, L, C_out)
    return jnp.transpose(out, (0, 2, 1))                            # (N, C_out, L)


def _reference_forward(x_ncl, weight, bias):
    """Pure-JAX reference (same semantics as nn.Conv1d + ReLU, eval dropout)."""
    y = jax.lax.conv_general_dilated(
        x_ncl, weight,
        window_strides=(1,), padding="SAME",
        dimension_numbers=("NCH", "OIH", "NCH"))
    y = y + bias[None, :, None]
    return jnp.maximum(y, 0.0)


if __name__ == "__main__":
    # Module hyperparameters (from ConvBlock.__init__ defaults).
    input_dim, out_dim, kernel_size = 4, 320, 15
    batch, seq_len = 2, 32

    key = jax.random.PRNGKey(0)
    kx, kw, kb = jax.random.split(key, 3)

    x = jax.random.normal(kx, (batch, input_dim, seq_len), dtype=jnp.float32)
    # Deterministic parameter init (shapes match nn.Conv1d(4, 320, 15)).
    fan_in = input_dim * kernel_size
    bound = 1.0 / (fan_in ** 0.5)
    weight = jax.random.uniform(kw, (out_dim, input_dim, kernel_size),
                                minval=-bound, maxval=bound, dtype=jnp.float32)
    bias = jax.random.uniform(kb, (out_dim,),
                              minval=-bound, maxval=bound, dtype=jnp.float32)

    out = conv_block_forward(x, weight, bias)
    out = jax.block_until_ready(out)

    ref = jax.block_until_ready(_reference_forward(x, weight, bias))
    assert out.shape == (batch, out_dim, seq_len)
    assert jnp.allclose(out, ref, atol=1e-4, rtol=1e-4), "mismatch vs reference"

    print("KERNEL_OK")
</pallas_src>

<mosaic_0001>
module attributes {stable_mosaic.version = 11 : i64} {
  func.func @_conv_block_gemm_kernel(%arg0: i32, %arg1: memref<64x128xf32, #tpu.memory_space<vmem>>, %arg2: memref<128x384xf32, #tpu.memory_space<vmem>>, %arg3: memref<1x384xf32, #tpu.memory_space<vmem>>, %arg4: memref<64x384xf32, #tpu.memory_space<vmem>>) attributes {dimension_semantics = [#tpu.dimension_semantics<parallel>], iteration_bounds = array<i64: 1>, scalar_prefetch = 0 : i64, scratch_operands = 0 : i64, tpu.core_type = #tpu.core_type<tc>, window_params = [{transform_indices = @transform_0, window_bounds = array<i64: 64, 128>}, {pipeline_mode = #tpu.pipeline_mode<synchronous>, transform_indices = @transform_1, window_bounds = array<i64: 128, 384>}, {pipeline_mode = #tpu.pipeline_mode<synchronous>, transform_indices = @transform_2, window_bounds = array<i64: 1, 384>}, {transform_indices = @transform_3, window_bounds = array<i64: 64, 384>}]} {
    %c0 = arith.constant 0 : index
    %c0_0 = arith.constant 0 : index
    %0 = vector.load %arg1[%c0, %c0_0] : memref<64x128xf32, #tpu.memory_space<vmem>>, vector<64x128xf32>
    %c0_1 = arith.constant 0 : index
    %c0_2 = arith.constant 0 : index
    %1 = vector.load %arg2[%c0_1, %c0_2] : memref<128x384xf32, #tpu.memory_space<vmem>>, vector<128x384xf32>
    %cst = arith.constant dense<0.000000e+00> : vector<64x384xf32>
    %2 = tpu.matmul %0, %1, %cst {dimension_numbers = #tpu.dot_dimension_numbers<[1], [0], [0], [1], [0, 0, 1, 1], [], []>} : vector<64x128xf32>, vector<128x384xf32>, vector<64x384xf32> -> vector<64x384xf32>
    %c0_3 = arith.constant 0 : index
    %c0_4 = arith.constant 0 : index
    %3 = vector.load %arg3[%c0_3, %c0_4] : memref<1x384xf32, #tpu.memory_space<vmem>>, vector<1x384xf32>
    %4 = vector.broadcast %3 : vector<1x384xf32> to vector<64x384xf32>
    %5 = arith.addf %2, %4 : vector<64x384xf32>
    %cst_5 = arith.constant 0.000000e+00 : f32
    %6 = vector.broadcast %cst_5 : f32 to vector<64x384xf32>
    %7 = arith.maximumf %5, %6 : vector<64x384xf32>
    %c0_6 = arith.constant 0 : index
    %c0_7 = arith.constant 0 : index
    %8 = vector.load %arg4[%c0_6, %c0_7] : memref<64x384xf32, #tpu.memory_space<vmem>>, vector<64x384xf32>
    tpu.vector_store %arg4[%c0_6, %c0_7], %7 {strides = array<i32>} : memref<64x384xf32, #tpu.memory_space<vmem>>, vector<64x384xf32>,
    return
  }
  func.func @transform_0(%arg0: i32) -> (i32, i32) {
    %c0_i32 = arith.constant 0 : i32
    %c0_i32_0 = arith.constant 0 : i32
    return %arg0, %c0_i32 : i32, i32
  }
  func.func @transform_1(%arg0: i32) -> (i32, i32) {
    %c0_i32 = arith.constant 0 : i32
    %c0_i32_0 = arith.constant 0 : i32
    %c0_i32_1 = arith.constant 0 : i32
    return %c0_i32, %c0_i32_0 : i32, i32
  }
  func.func @transform_2(%arg0: i32) -> (i32, i32) {
    %c0_i32 = arith.constant 0 : i32
    %c0_i32_0 = arith.constant 0 : i32
    %c0_i32_1 = arith.constant 0 : i32
    return %c0_i32, %c0_i32_0 : i32, i32
  }
  func.func @transform_3(%arg0: i32) -> (i32, i32) {
    %c0_i32 = arith.constant 0 : i32
    %c0_i32_0 = arith.constant 0 : i32
    return %arg0, %c0_i32 : i32, i32
  }
}

</mosaic_0001>

<llo_original>
// kernel: conv_block_forward.1
$region0: #{conv_block_forward.1}
  #allocation0 [shape = 'u32[]', space=smem, size = 0x4, offset = 0x4, fixed_abs, tag = 'smem constant byte address 0x4 - core index']
  #allocation1 [shape = 'u32[144,128]{1,0:T(1,128)}', space=vmem, size = 0x12000, scoped, tag = 'internal scratch']
  %s0 = inlined_call_operand.vmem [shape: f32[64,128], index: 0, kind: input, shape index: {}]
  %s1 = inlined_call_operand.vmem [shape: f32[128,384], index: 1, kind: input, shape index: {}]
  %s2 = inlined_call_operand.vmem [shape: f32[1,384], index: 2, kind: input, shape index: {}]
  %s3 = inlined_call_operand.hbm [shape: f32[64,384], index: 3, kind: output, shape index: {}]
  %s4 = sld [smem:[#allocation0]]
  $region22: #{conv_block_forward.1} parent=0
    _
  %s6 = ssub.s32 1, %s4
  %s7 = scalar_select 0, %s6, %s4
  $region1: #{conv_block_forward.1} parent=0
    #allocation2 [shape = 'u8[98304]{0}', space=vmem, size = 0x18000, scoped, tag = 'output window, operand 0, single buffered']
    #allocation3 [shape = 's32[1]{0}', space=sflag, size = 0x4, scoped, tag = 'scoped memory for conv_block_forward.1']
    %8 = vsyncpa [#allocation3], 0
    // Predicated region
    $region2: #{conv_block_forward.1} parent=1 // pred_check
      _
    $region3: #{conv_block_forward.1} parent=1 // pred_check_branch
      %10 = sbr.rel (0) target = $region5
    $region4: #{conv_block_forward.1} parent=1 // pred_region
      _
    $region5: #{conv_block_forward.1} parent=1 // pred_fallthru
      _
    // Predicated region
    $region6: #{conv_block_forward.1} parent=1 // pred_check
      _
    $region7: #{conv_block_forward.1} parent=1 // pred_check_branch
      %12 = sbr.rel (0) target = $region9
    $region8: #{conv_block_forward.1} parent=1 // pred_region
      _
    $region9: #{conv_block_forward.1} parent=1 // pred_fallthru
      _
    // Predicated region
    $region10: #{conv_block_forward.1} parent=1 // pred_check
      _
    $region11: #{conv_block_forward.1} parent=1 // pred_check_branch
      %14 = sbr.rel (0) target = $region13
    $region12: #{conv_block_forward.1} parent=1 // pred_region
      _
    $region13: #{conv_block_forward.1} parent=1 // pred_fallthru
      _
    %v15 = vld [vmem:[%s0] sm:$0xff]
    %v16 = vld [vmem:[%s0 + $0x8] sm:$0xff]
    %v17 = vld [vmem:[%s0 + $0x10] sm:$0xff]
    %v18 = vld [vmem:[%s0 + $0x18] sm:$0xff]
    %v19 = vld [vmem:[%s0 + $0x20] sm:$0xff]
    %v20 = vld [vmem:[%s0 + $0x28] sm:$0xff]
    %v21 = vld [vmem:[%s0 + $0x30] sm:$0xff]
    %v22 = vld [vmem:[%s0 + $0x38] sm:$0xff]
    %v23 = vld [vmem:[%s1] sm:$0xff]
    %v24 = vld [vmem:[%s1 + $0x8] sm:$0xff]
    %v25 = vld [vmem:[%s1 + $0x10] sm:$0xff]
    %v26 = vld [vmem:[%s1 + $0x18] sm:$0xff]
    %v27 = vld [vmem:[%s1 + $0x20] sm:$0xff]
    %v28 = vld [vmem:[%s1 + $0x28] sm:$0xff]
    %v29 = vld [vmem:[%s1 + $0x30] sm:$0xff]
    %v30 = vld [vmem:[%s1 + $0x38] sm:$0xff]
    %v31 = vld [vmem:[%s1 + $0x40] sm:$0xff]
    %v32 = vld [vmem:[%s1 + $0x48] sm:$0xff]
    %v33 = vld [vmem:[%s1 + $0x50] sm:$0xff]
    %v34 = vld [vmem:[%s1 + $0x58] sm:$0xff]
    %v35 = vld [vmem:[%s1 + $0x60] sm:$0xff]
    %v36 = vld [vmem:[%s1 + $0x68] sm:$0xff]
    %v37 = vld [vmem:[%s1 + $0x70] sm:$0xff]
    %v38 = vld [vmem:[%s1 + $0x78] sm:$0xff]
    %v39 = vld [vmem:[%s1 + $0x80] sm:$0xff]
    %v40 = vld [vmem:[%s1 + $0x88] sm:$0xff]
    %v41 = vld [vmem:[%s1 + $0x90] sm:$0xff]
    %v42 = vld [vmem:[%s1 + $0x98] sm:$0xff]
    %v43 = vld [vmem:[%s1 + $0xa0] sm:$0xff]
    %v44 = vld [vmem:[%s1 + $0xa8] sm:$0xff]
    %v45 = vld [vmem:[%s1 + $0xb0] sm:$0xff]
    %v46 = vld [vmem:[%s1 + $0xb8] sm:$0xff]
    %v47 = vld [vmem:[%s1 + $0xc0] sm:$0xff]
    %v48 = vld [vmem:[%s1 + $0xc8] sm:$0xff]
    %v49 = vld [vmem:[%s1 + $0xd0] sm:$0xff]
    %v50 = vld [vmem:[%s1 + $0xd8] sm:$0xff]
    %v51 = vld [vmem:[%s1 + $0xe0] sm:$0xff]
    %v52 = vld [vmem:[%s1 + $0xe8] sm:$0xff]
    %v53 = vld [vmem:[%s1 + $0xf0] sm:$0xff]
    %v54 = vld [vmem:[%s1 + $0xf8] sm:$0xff]
    %v55 = vld [vmem:[%s1 + $0x100] sm:$0xff]
    %v56 = vld [vmem:[%s1 + $0x108] sm:$0xff]
    %v57 = vld [vmem:[%s1 + $0x110] sm:$0xff]
    %v58 = vld [vmem:[%s1 + $0x118] sm:$0xff]
    %v59 = vld [vmem:[%s1 + $0x120] sm:$0xff]
    %v60 = vld [vmem:[%s1 + $0x128] sm:$0xff]
    %v61 = vld [vmem:[%s1 + $0x130] sm:$0xff]
    %v62 = vld [vmem:[%s1 + $0x138] sm:$0xff]
    %v63 = vld [vmem:[%s1 + $0x140] sm:$0xff]
    %v64 = vld [vmem:[%s1 + $0x148] sm:$0xff]
    %v65 = vld [vmem:[%s1 + $0x150] sm:$0xff]
    %v66 = vld [vmem:[%s1 + $0x158] sm:$0xff]
    %v67 = vld [vmem:[%s1 + $0x160] sm:$0xff]
    %v68 = vld [vmem:[%s1 + $0x168] sm:$0xff]
    %v69 = vld [vmem:[%s1 + $0x170] sm:$0xff]
    %v70 = vld [vmem:[%s1 + $0x178] sm:$0xff]
    %v71 = vld [vmem:[%s2] sm:$0x7]
    %v73 = vlaneseq
    %v74 = vshrl.u32 %v73, 7
    %v75 = vsub.s32 0, %v74
    %v76 = vrot.slane %v71, %v75
    %v77 = vlaneseq
    %v78 = vshrl.u32 %v77, 7
    %v79 = vsub.s32 1, %v78
    %v80 = vrot.slane %v71, %v79
    %v81 = vlaneseq
    %v82 = vshrl.u32 %v81, 7
    %v83 = vsub.s32 2, %v82
    %v84 = vrot.slane %v71, %v83
    %88 = vmatprep.subr.mxu0 %v24
    %89 = vmatpush1.msra.mxu0 %v23
    %90 = vmatprep.subr.mxu0 %v27
    %91 = vmatpush1.msra.mxu0 %v26
    %92 = vmatprep.subr.mxu0 %v30
    %93 = vmatpush1.msra.mxu0 %v29
    %94 = vmatprep.subr.mxu0 %v33
    %95 = vmatpush1.msra.mxu0 %v32
    %96 = vmatprep.subr.mxu0 %v36
    %97 = vmatpush1.msra.mxu0 %v35
    %98 = vmatprep.subr.mxu0 %v39
    %99 = vmatpush1.msra.mxu0 %v38
    %100 = vmatprep.subr.mxu0 %v42
    %101 = vmatpush1.msra.mxu0 %v41
    %102 = vmatprep.subr.mxu0 %v45
    %103 = vmatpush1.msra.mxu0 %v44
    %104 = vmatprep.subr.mxu0 %v48
    %105 = vmatpush1.msra.mxu0 %v47
    %106 = vmatprep.subr.mxu0 %v51
    %107 = vmatpush1.msra.mxu0 %v50
    %108 = vmatprep.subr.mxu0 %v54
    %109 = vmatpush1.msra.mxu0 %v53
    %110 = vmatprep.subr.mxu0 %v57
    %111 = vmatpush1.msra.mxu0 %v56
    %112 = vmatprep.subr.mxu0 %v60
    %113 = vmatpush1.msra.mxu0 %v59
    %114 = vmatprep.subr.mxu0 %v63
    %115 = vmatpush1.msra.mxu0 %v62
    %116 = vmatprep.subr.mxu0 %v66
    %117 = vmatpush1.msra.mxu0 %v65
    %118 = vmatprep.subr.mxu0 %v69
    %119 = vmatpush1.msra.mxu0 %v68
    %120 = vmatprep.subr.mxu0 0.0
    %121 = vmatpush1.msra.mxu0 0.0
    %122 = vmatprep.subr.mxu0 0.0
    %123 = vmatpush1.msra.mxu0 0.0
    %124 = vmatprep.subr.mxu0 0.0
    %125 = vmatpush1.msra.mxu0 0.0
    %126 = vmatprep.subr.mxu0 0.0
    %127 = vmatpush1.msra.mxu0 0.0
    %128 = vmatprep.subr.mxu0 0.0
    %129 = vmatpush1.msra.mxu0 0.0
    %130 = vmatprep.subr.mxu0 0.0
    %131 = vmatpush1.msra.mxu0 0.0
    %132 = vmatprep.subr.mxu0 0.0
    %133 = vmatpush1.msra.mxu0 0.0
    %134 = vmatprep.subr.mxu0 0.0
    %135 = vmatpush1.msra.mxu0 0.0
    %136 = vmatprep.subr.mxu0 0.0
    %137 = vmatpush1.msra.mxu0 0.0
    %138 = vmatprep.subr.mxu0 0.0
    %139 = vmatpush1.msra.mxu0 0.0
    %140 = vmatprep.subr.mxu0 0.0
    %141 = vmatpush1.msra.mxu0 0.0
    %142 = vmatprep.subr.mxu0 0.0
    %143 = vmatpush1.msra.mxu0 0.0
    %144 = vmatprep.subr.mxu0 0.0
    %145 = vmatpush1.msra.mxu0 0.0
    %146 = vmatprep.subr.mxu0 0.0
    %147 = vmatpush1.msra.mxu0 0.0
    %148 = vmatprep.subr.mxu0 0.0
    %149 = vmatpush1.msra.mxu0 0.0
    %150 = vmatprep.subr.mxu0 0.0
    %151 = vmatpush1.msra.mxu0 0.0
    %152 = vmatprep.mubr.f32.mxu0 0.0
    %153 = vmatmul.mubr.f32.gmra.mrb[0].mxu0 %v15
    %v154 = vpop.f32.mrb[0].mxu0
    %v155 = vadd.f32 %v76, %v154
    %v156 = vpop.f32.mrb[0].mxu0
    %v157 = vadd.f32 %v80, %v156
    %158 = vmatprep.mubr.f32.mxu0 0.0
    %159 = vmatmul.mubr.f32.gmra.mrb[0].mxu0 %v16
    %v160 = vpop.f32.mrb[0].mxu0
    %v161 = vadd.f32 %v76, %v160
    %v162 = vpop.f32.mrb[0].mxu0
    %v163 = vadd.f32 %v80, %v162
    %164 = vmatprep.mubr.f32.mxu0 0.0
    %165 = vmatmul.mubr.f32.gmra.mrb[0].mxu0 %v17
    %v166 = vpop.f32.mrb[0].mxu0
    %v167 = vadd.f32 %v76, %v166
    %v168 = vpop.f32.mrb[0].mxu0
    %v169 = vadd.f32 %v80, %v168
    %170 = vmatprep.mubr.f32.mxu0 0.0
    %171 = vmatmul.mubr.f32.gmra.mrb[0].mxu0 %v18
    %v172 = vpop.f32.mrb[0].mxu0
    %v173 = vadd.f32 %v76, %v172
    %v174 = vpop.f32.mrb[0].mxu0
    %v175 = vadd.f32 %v80, %v174
    %176 = vmatprep.mubr.f32.mxu0 0.0
    %177 = vmatmul.mubr.f32.gmra.mrb[0].mxu0 %v19
    %v178 = vpop.f32.mrb[0].mxu0
    %v179 = vadd.f32 %v76, %v178
    %v180 = vpop.f32.mrb[0].mxu0
    %v181 = vadd.f32 %v80, %v180
    %182 = vmatprep.mubr.f32.mxu0 0.0
    %183 = vmatmul.mubr.f32.gmra.mrb[0].mxu0 %v20
    %v184 = vpop.f32.mrb[0].mxu0
    %v185 = vadd.f32 %v76, %v184
    %v186 = vpop.f32.mrb[0].mxu0
    %v187 = vadd.f32 %v80, %v186
    %188 = vmatprep.mubr.f32.mxu0 0.0
    %189 = vmatmul.mubr.f32.gmra.mrb[0].mxu0 %v21
    %v190 = vpop.f32.mrb[0].mxu0
    %v191 = vadd.f32 %v76, %v190
    %v192 = vpop.f32.mrb[0].mxu0
    %v193 = vadd.f32 %v80, %v192
    %194 = vmatprep.mubr.f32.mxu0 0.0
    %195 = vmatmul.mubr.f32.gmra.mrb[0].mxu0 %v22
    %v196 = vpop.f32.mrb[0].mxu0
    %v197 = vadd.f32 %v76, %v196
    %v198 = vpop.f32.mrb[0].mxu0
    %v199 = vadd.f32 %v80, %v198
    %200 = vdwg.mxu0
    %201 = vmatprep.subr.mxu0 0.0
    %202 = vmatpush1.msra.mxu0 %v25
    %203 = vmatprep.subr.mxu0 0.0
    %204 = vmatpush1.msra.mxu0 %v28
    %205 = vmatprep.subr.mxu0 0.0
    %206 = vmatpush1.msra.mxu0 %v31
    %207 = vmatprep.subr.mxu0 0.0
    %208 = vmatpush1.msra.mxu0 %v34
    %209 = vmatprep.subr.mxu0 0.0
    %210 = vmatpush1.msra.mxu0 %v37
    %211 = vmatprep.subr.mxu0 0.0
    %212 = vmatpush1.msra.mxu0 %v40
    %213 = vmatprep.subr.mxu0 0.0
    %214 = vmatpush1.msra.mxu0 %v43
    %215 = vmatprep.subr.mxu0 0.0
    %216 = vmatpush1.msra.mxu0 %v46
    %217 = vmatprep.subr.mxu0 0.0
    %218 = vmatpush1.msra.mxu0 %v49
    %219 = vmatprep.subr.mxu0 0.0
    %220 = vmatpush1.msra.mxu0 %v52
    %221 = vmatprep.subr.mxu0 0.0
    %222 = vmatpush1.msra.mxu0 %v55
    %223 = vmatprep.subr.mxu0 0.0
    %224 = vmatpush1.msra.mxu0 %v58
    %225 = vmatprep.subr.mxu0 0.0
    %226 = vmatpush1.msra.mxu0 %v61
    %227 = vmatprep.subr.mxu0 0.0
    %228 = vmatpush1.msra.mxu0 %v64
    %229 = vmatprep.subr.mxu0 0.0
    %230 = vmatpush1.msra.mxu0 %v67
    %231 = vmatprep.subr.mxu0 0.0
    %232 = vmatpush1.msra.mxu0 %v70
    %233 = vmatprep.subr.mxu0 0.0
    %234 = vmatpush1.msra.mxu0 0.0
    %235 = vmatprep.subr.mxu0 0.0
    %236 = vmatpush1.msra.mxu0 0.0
    %237 = vmatprep.subr.mxu0 0.0
    %238 = vmatpush1.msra.mxu0 0.0
    %239 = vmatprep.subr.mxu0 0.0
    %240 = vmatpush1.msra.mxu0 0.0
    %241 = vmatprep.subr.mxu0 0.0
    %242 = vmatpush1.msra.mxu0 0.0
    %243 = vmatprep.subr.mxu0 0.0
    %244 = vmatpush1.msra.mxu0 0.0
    %245 = vmatprep.subr.mxu0 0.0
    %246 = vmatpush1.msra.mxu0 0.0
    %247 = vmatprep.subr.mxu0 0.0
    %248 = vmatpush1.msra.mxu0 0.0
    %249 = vmatprep.subr.mxu0 0.0
    %250 = vmatpush1.msra.mxu0 0.0
    %251 = vmatprep.subr.mxu0 0.0
    %252 = vmatpush1.msra.mxu0 0.0
    %253 = vmatprep.subr.mxu0 0.0
    %254 = vmatpush1.msra.mxu0 0.0
    %255 = vmatprep.subr.mxu0 0.0
    %256 = vmatpush1.msra.mxu0 0.0
    %257 = vmatprep.subr.mxu0 0.0
    %258 = vmatpush1.msra.mxu0 0.0
    %259 = vmatprep.subr.mxu0 0.0
    %260 = vmatpush1.msra.mxu0 0.0
    %261 = vmatprep.subr.mxu0 0.0
    %262 = vmatpush1.msra.mxu0 0.0
    %263 = vmatprep.subr.mxu0 0.0
    %264 = vmatpush1.msra.mxu0 0.0
    %265 = vmatprep.mubr.f32.mxu0 0.0
    %266 = vmatmul.mubr.f32.gmra.mrb[0].mxu0 %v15
    %v267 = vpop.f32.mrb[0].mxu0
    %v268 = vadd.f32 %v84, %v267
    %v269 = vpop.f32.mrb[0].mxu0
    %270 = vmatprep.mubr.f32.mxu0 0.0
    %271 = vmatmul.mubr.f32.gmra.mrb[0].mxu0 %v16
    %v272 = vpop.f32.mrb[0].mxu0
    %v273 = vadd.f32 %v84, %v272
    %v274 = vpop.f32.mrb[0].mxu0
    %275 = vmatprep.mubr.f32.mxu0 0.0
    %276 = vmatmul.mubr.f32.gmra.mrb[0].mxu0 %v17
    %v277 = vpop.f32.mrb[0].mxu0
    %v278 = vadd.f32 %v84, %v277
    %v279 = vpop.f32.mrb[0].mxu0
    %280 = vmatprep.mubr.f32.mxu0 0.0
    %281 = vmatmul.mubr.f32.gmra.mrb[0].mxu0 %v18
    %v282 = vpop.f32.mrb[0].mxu0
    %v283 = vadd.f32 %v84, %v282
    %v284 = vpop.f32.mrb[0].mxu0
    %285 = vmatprep.mubr.f32.mxu0 0.0
    %286 = vmatmul.mubr.f32.gmra.mrb[0].mxu0 %v19
    %v287 = vpop.f32.mrb[0].mxu0
    %v288 = vadd.f32 %v84, %v287
    %v289 = vpop.f32.mrb[0].mxu0
    %290 = vmatprep.mubr.f32.mxu0 0.0
    %291 = vmatmul.mubr.f32.gmra.mrb[0].mxu0 %v20
    %v292 = vpop.f32.mrb[0].mxu0
    %v293 = vadd.f32 %v84, %v292
    %v294 = vpop.f32.mrb[0].mxu0
    %295 = vmatprep.mubr.f32.mxu0 0.0
    %296 = vmatmul.mubr.f32.gmra.mrb[0].mxu0 %v21
    %v297 = vpop.f32.mrb[0].mxu0
    %v298 = vadd.f32 %v84, %v297
    %v299 = vpop.f32.mrb[0].mxu0
    %300 = vmatprep.mubr.f32.mxu0 0.0
    %301 = vmatmul.mubr.f32.gmra.mrb[0].mxu0 %v22
    %v302 = vpop.f32.mrb[0].mxu0
    %v303 = vadd.f32 %v84, %v302
    %v304 = vpop.f32.mrb[0].mxu0
    %305 = vdwg.mxu0
    %v306 = vmax.f32 %v155, 0.0
    %v307 = vmax.f32 %v157, 0.0
    %v308 = vmax.f32 %v268, 0.0
    %v309 = vmax.f32 %v161, 0.0
    %v310 = vmax.f32 %v163, 0.0
    %v311 = vmax.f32 %v273, 0.0
    %v312 = vmax.f32 %v167, 0.0
    %v313 = vmax.f32 %v169, 0.0
    %v314 = vmax.f32 %v278, 0.0
    %v315 = vmax.f32 %v173, 0.0
    %v316 = vmax.f32 %v175, 0.0
    %v317 = vmax.f32 %v283, 0.0
    %v318 = vmax.f32 %v179, 0.0
    %v319 = vmax.f32 %v181, 0.0
    %v320 = vmax.f32 %v288, 0.0
    %v321 = vmax.f32 %v185, 0.0
    %v322 = vmax.f32 %v187, 0.0
    %v323 = vmax.f32 %v293, 0.0
    %v324 = vmax.f32 %v191, 0.0
    %v325 = vmax.f32 %v193, 0.0
    %v326 = vmax.f32 %v298, 0.0
    %v327 = vmax.f32 %v197, 0.0
    %v328 = vmax.f32 %v199, 0.0
    %v329 = vmax.f32 %v303, 0.0
    %330 = vst [vmem:[#allocation2] sm:$0xff] %v306
    %331 = vst [vmem:[#allocation2 + $0x8] sm:$0xff] %v307
    %332 = vst [vmem:[#allocation2 + $0x10] sm:$0xff] %v308
    %333 = vst [vmem:[#allocation2 + $0x18] sm:$0xff] %v309
    %334 = vst [vmem:[#allocation2 + $0x20] sm:$0xff] %v310
    %335 = vst [vmem:[#allocation2 + $0x28] sm:$0xff] %v311
    %336 = vst [vmem:[#allocation2 + $0x30] sm:$0xff] %v312
    %337 = vst [vmem:[#allocation2 + $0x38] sm:$0xff] %v313
    %338 = vst [vmem:[#allocation2 + $0x40] sm:$0xff] %v314
    %339 = vst [vmem:[#allocation2 + $0x48] sm:$0xff] %v315
    %340 = vst [vmem:[#allocation2 + $0x50] sm:$0xff] %v316
    %341 = vst [vmem:[#allocation2 + $0x58] sm:$0xff] %v317
    %342 = vst [vmem:[#allocation2 + $0x60] sm:$0xff] %v318
    %343 = vst [vmem:[#allocation2 + $0x68] sm:$0xff] %v319
    %344 = vst [vmem:[#allocation2 + $0x70] sm:$0xff] %v320
    %345 = vst [vmem:[#allocation2 + $0x78] sm:$0xff] %v321
    %346 = vst [vmem:[#allocation2 + $0x80] sm:$0xff] %v322
    %347 = vst [vmem:[#allocation2 + $0x88] sm:$0xff] %v323
    %348 = vst [vmem:[#allocation2 + $0x90] sm:$0xff] %v324
    %349 = vst [vmem:[#allocation2 + $0x98] sm:$0xff] %v325
    %350 = vst [vmem:[#allocation2 + $0xa0] sm:$0xff] %v326
    %351 = vst [vmem:[#allocation2 + $0xa8] sm:$0xff] %v327
    %352 = vst [vmem:[#allocation2 + $0xb0] sm:$0xff] %v328
    %353 = vst [vmem:[#allocation2 + $0xb8] sm:$0xff] %v329
    // Predicated region
    $region14: #{conv_block_forward.1} parent=1 // pred_check
      _
    $region15: #{conv_block_forward.1} parent=1 // pred_check_branch
      %355 = sbr.rel (0) target = $region17
    $region16: #{conv_block_forward.1} parent=1 // pred_region
      %s357 = ssub.s32 3072, 3072
      %358 = vsyncadd [#allocation3], %s357
      %s359 = sshll.u32 [#allocation2], 4
      %s360 = int_to_ptr.vmem [resolvable:$true] %s359
      %365 = dma.vmem_to_hbm [thread:$0]  %s360, 3072, %s3, [#allocation3], 384, 384, 24
    $region17: #{conv_block_forward.1} parent=1 // pred_fallthru
      _
    // Predicated region
    $region18: #{conv_block_forward.1} parent=1 // pred_check
      _
    $region19: #{conv_block_forward.1} parent=1 // pred_check_branch
      %367 = sbr.rel (0) target = $region21
    $region20: #{conv_block_forward.1} parent=1 // pred_region
      %368 = dma.done [#allocation3], 3072
    $region21: #{conv_block_forward.1} parent=1 // pred_fallthru
      _
    %369 = vsyncpa [#allocation3], 1

</llo_original>
